<compile_context>
chip_gen: v6e
topology: v6e:2x2x1
jax: 0.10.0
libtpu: 0.0.40
codegen_flags: <defaults>
</compile_context>

<pallas_src>
import functools

import jax
import jax.numpy as jnp
from jax import lax
from jax.experimental import pallas as pl
from jax.experimental.pallas import tpu as pltpu


_SQRT_HALF = 0.7071067811865476
_SQRT_2_OVER_PI = 0.7978845608028654


def _gelu(x, approximate):
    if approximate:
        # tanh GELU: the transcendental goes to the EUP slot and co-issues
        # with MXU work instead of the erf polynomial on the VPU.
        return 0.5 * x * (1.0 + jnp.tanh(_SQRT_2_OVER_PI
                                         * (x + 0.044715 * (x * x * x))))
    # Exact erf-based GELU (PyTorch nn.GELU() default).
    return 0.5 * x * (1.0 + lax.erf(x * _SQRT_HALF))


# ---------------------------------------------------------------------------
# Kernel
# ---------------------------------------------------------------------------
def _semlp_kernel(scale_ref, x_ref, w_p1_ref, b_p1_ref, w_p2_ref, b_p2_ref,
                  out_ref, y_ref, *, approximate_gelu, y_chunk):
    """One grid step = (batch b, token tile n, output-column tile o).

    y = gelu(x*(gate+1) @ W_p1 + b_p1) is computed once per (b, n) at o == 0
    (chunked over O strips to bound the f32 intermediate) and kept resident
    in VMEM scratch across the innermost ("arbitrary") output-column axis.
    """
    o_pad = y_ref.shape[-1]
    n_chunks = o_pad // y_chunk

    @pl.when(pl.program_id(2) == 0)
    def _():
        # scale (= gate + 1) stays f32; multiply in f32, round once to the
        # compute dtype so the MXU sees a narrow LHS.
        xg = (x_ref[0].astype(jnp.float32) * scale_ref[0]).astype(x_ref.dtype)

        if n_chunks == 1:
            y = jnp.dot(xg, w_p1_ref[...],
                        preferred_element_type=jnp.float32) + b_p1_ref[...]
            y_ref[...] = _gelu(y, approximate_gelu).astype(y_ref.dtype)
        else:
            def strip(j, carry):
                js = pl.multiple_of(j * y_chunk, y_chunk)
                y = jnp.dot(xg, w_p1_ref[:, pl.ds(js, y_chunk)],
                            preferred_element_type=jnp.float32)
                y = y + b_p1_ref[:, pl.ds(js, y_chunk)]         # f32 bias
                y_ref[:, pl.ds(js, y_chunk)] = _gelu(
                    y, approximate_gelu).astype(y_ref.dtype)
                return carry
            lax.fori_loop(0, n_chunks, strip, 0)

    out = jnp.dot(y_ref[...], w_p2_ref[...],
                  preferred_element_type=jnp.float32) + b_p2_ref[...]
    out_ref[0] = out.astype(out_ref.dtype)


# ---------------------------------------------------------------------------
# Layout / budget helpers
# ---------------------------------------------------------------------------
def _device_vmem_capacity_bytes():
    try:
        return int(pltpu.get_tpu_info().vmem_capacity_bytes)
    except Exception:               # conservative fallback (v7x per-TC VMEM)
        return 64 * 2 ** 20


def _choose_token_tile(n, preferred, multiple):
    """Token tile: aligned exact divisor of N when possible, else the tile
    (within [preferred/4, preferred]) that minimizes zero-padding."""
    if n <= preferred:
        return n, n
    pref = max((preferred // multiple) * multiple, multiple)
    lo = max(multiple, (pref // 4 // multiple) * multiple)
    best_t, best_pad = pref, (-n) % pref
    t = pref
    while t >= lo:
        pad = (-n) % t
        if pad == 0:
            return t, n                       # largest aligned exact divisor
        if pad < best_pad:
            best_t, best_pad = t, pad
        t -= multiple
    return best_t, n + best_pad


def _vmem_need(tn, to, c, o_pad, cdt_size, out_size, w2_bufs):
    """VMEM footprint of a layout (weights single/multi-buffered as used)."""
    need = (
        2 * c * 4                        # scale (f32), double-buffered
        + 2 * tn * c * cdt_size          # x token tile, double-buffered
        + c * o_pad * cdt_size           # W_p1, Buffered(1)
        + o_pad * 4                      # b_p1 (f32), Buffered(1)
        + tn * o_pad * cdt_size          # y scratch
        + 2 * tn * to * out_size         # out tile, double-buffered
    )
    if to == o_pad:                      # W_p2 fully resident, Buffered(1)
        need += o_pad * o_pad * cdt_size + o_pad * 4
    else:                                # streamed column tiles
        need += w2_bufs * (o_pad * to * cdt_size + to * 4)
    return need


def _choose_layout(n, c, o_pad, tile_n, tile_o, cdt_size, out_size, budget):
    """Pick (tn, N_pad, to, w2_bufs) that fits the device VMEM budget."""
    sub = {4: 8, 2: 16, 1: 32}.get(cdt_size, 8)   # dtype-aware sublane multiple
    resid_allowed = tile_o is None or tile_o >= o_pad
    stream_pref = o_pad if tile_o is None else tile_o
    stream_pref = max((min(stream_pref, 512) // 128) * 128, 128)

    tn_pref = tile_n
    while True:
        tn, n_pad = _choose_token_tile(n, tn_pref, sub)
        # (a) W_p2 fully resident: DMA'd exactly once -> MXU-bound (v5e/v6e).
        if resid_allowed and _vmem_need(tn, o_pad, c, o_pad, cdt_size,
                                        out_size, 1) <= budget:
            return tn, n_pad, o_pad, 1
        # (b) stream W_p2 column tiles (v7x); 3-deep buffering preferred so
        #     the DMAs run ahead during the heavy o == 0 step.
        for bufs in (3, 2):
            to = stream_pref
            while to >= 128:
                if o_pad % to == 0 and _vmem_need(tn, to, c, o_pad, cdt_size,
                                                  out_size, bufs) <= budget:
                    return tn, n_pad, to, bufs
                to -= 128
        # (c) nothing fits: shrink the token tile and retry.
        if tn_pref <= sub:
            tn, n_pad = _choose_token_tile(n, sub, sub)
            return tn, n_pad, min(128, o_pad), 2
        tn_pref = max(sub, tn_pref // 2)


def _pick_chunk(o_pad, preferred=None):
    """First-layer matmul strip width: multiple of 128 dividing O_pad."""
    pref = 512 if preferred is None else preferred
    if o_pad <= pref:
        return o_pad
    p = max((pref // 128) * 128, 128)
    while p >= 128:
        if o_pad % p == 0:
            return p
        p -= 128
    return o_pad


# ---------------------------------------------------------------------------
# Wrapper
# ---------------------------------------------------------------------------
def semlp_pallas(x, w_se1, w_se2, w_p1, b_p1, w_p2, b_p2, *,
                 tile_n=512, tile_o=None, compute_dtype=jnp.bfloat16,
                 approximate_gelu=True, first_layer_chunk=None):
    """SEMLP forward.  x: (B, N, C); weights stored (in, out); biases (1, out).

    Defaults are the performance path (bf16 MXU inputs, f32 accumulation,
    tanh GELU).  Pass compute_dtype=jnp.float32, approximate_gelu=False for
    parity with the PyTorch module (exact erf GELU).
    """
    B, N, C = x.shape
    O = w_p1.shape[1]
    out_dtype = x.dtype
    cdt = jnp.dtype(compute_dtype)
    cdt_size = cdt.itemsize
    out_size = jnp.dtype(out_dtype).itemsize

    # ---- SE gate, hoisted out of the hot kernel (two 1-row matmuls per
    # batch; kept in f32).  x*gate + x == x*(gate + 1). ----
    hp = lax.Precision.HIGHEST
    g = jnp.mean(x.astype(jnp.float32), axis=1, keepdims=True)        # (B,1,C)
    h = _gelu(jnp.matmul(g, w_se1.astype(jnp.float32), precision=hp),
              approximate_gelu)
    gate = jax.nn.sigmoid(jnp.matmul(h, w_se2.astype(jnp.float32),
                                     precision=hp))                   # (B,1,C)
    scale = gate + 1.0                                                # f32

    # ---- projection-path operands: matmul inputs in compute dtype (bf16 by
    # default -> full MXU rate, half the DMA); biases stay f32 and are added
    # to the f32 accumulators inside the kernel. ----
    xc = x.astype(cdt)
    w_p1c = w_p1.astype(cdt)
    w_p2c = w_p2.astype(cdt)
    b_p1c = b_p1.astype(jnp.float32)
    b_p2c = b_p2.astype(jnp.float32)

    # ---- lane-dense output: zero-pad O to a multiple of 128 (unmasked vst).
    # Padding is exact: padded W_p1/b_p1 columns are 0 -> gelu(0) == 0, and
    # padded W_p2 rows/columns and b_p2 entries are 0.
    O_pad = ((O + 127) // 128) * 128
    if O_pad != O:
        p = O_pad - O
        w_p1c = jnp.pad(w_p1c, ((0, 0), (0, p)))
        b_p1c = jnp.pad(b_p1c, ((0, 0), (0, p)))
        w_p2c = jnp.pad(w_p2c, ((0, p), (0, p)))
        b_p2c = jnp.pad(b_p2c, ((0, 0), (0, p)))
    # TODO(synk): at production shapes pre-pad the weights offline and keep
    # O_pad end-to-end so the post-kernel slice below disappears.

    # ---- device-aware tiling: v5e/v6e (128 MiB VMEM) keep W_p2 fully
    # resident; v7x (64 MiB) streams W_p2 column tiles with a larger token
    # tile instead. ----
    vmem_cap = _device_vmem_capacity_bytes()
    budget = int(vmem_cap * 0.85)        # headroom for Mosaic internal scratch
    tn, N_pad, to, w2_bufs = _choose_layout(N, C, O_pad, tile_n, tile_o,
                                            cdt_size, out_size, budget)
    if N_pad != N:                       # pad tokens; padded rows sliced off
        xc = jnp.pad(xc, ((0, 0), (0, N_pad - N), (0, 0)))

    y_chunk = _pick_chunk(O_pad, first_layer_chunk)
    grid = (B, N_pad // tn, O_pad // to)
    w2_resident = to == O_pad
    w2_mode = pl.Buffered(1 if w2_resident else w2_bufs)
    # NOTE(v7x megacore): keep B * (N_pad // tn) >= 2 so the two TensorCores
    # split the "parallel" axes; B >= 2 already guarantees this.

    in_specs = [
        pl.BlockSpec((1, 1, C), lambda b, n, o: (b, 0, 0)),      # scale (f32)
        pl.BlockSpec((1, tn, C), lambda b, n, o: (b, n, 0)),     # x token tile
        pl.BlockSpec((C, O_pad), lambda b, n, o: (0, 0),
                     pipeline_mode=pl.Buffered(1)),              # W_p1 (const)
        pl.BlockSpec((1, O_pad), lambda b, n, o: (0, 0),
                     pipeline_mode=pl.Buffered(1)),              # b_p1 (const)
        pl.BlockSpec((O_pad, to), lambda b, n, o: (0, o),
                     pipeline_mode=w2_mode),                     # W_p2
        pl.BlockSpec((1, to), lambda b, n, o: (0, o),
                     pipeline_mode=w2_mode),                     # b_p2
    ]
    out_specs = pl.BlockSpec((1, tn, to), lambda b, n, o: (b, n, o))

    # Advisory cost hint: kernel-only flops (SE gate runs outside); W_p2 is
    # re-fetched once per (b, n) token tile when streamed, once when resident.
    w2_fetches = 1 if w2_resident else B * (N_pad // tn)
    cost = pl.CostEstimate(
        flops=2 * B * N_pad * O_pad * (C + O_pad) + 2 * B * N_pad * C,
        transcendentals=B * N_pad * O_pad,
        bytes_accessed=(xc.size * cdt_size + scale.size * 4
                        + w_p1c.size * cdt_size + b_p1c.size * 4
                        + w2_fetches * (w_p2c.size * cdt_size + b_p2c.size * 4)
                        + B * N_pad * O_pad * out_size),
    )

    need = _vmem_need(tn, to, C, O_pad, cdt_size, out_size, w2_bufs)
    vmem_limit = int(min(max(need * 1.25, 32 * 2 ** 20),
                         vmem_cap - (4 << 20)))

    out = pl.pallas_call(
        functools.partial(_semlp_kernel, approximate_gelu=approximate_gelu,
                          y_chunk=y_chunk),
        out_shape=jax.ShapeDtypeStruct((B, N_pad, O_pad), out_dtype),
        grid_spec=pltpu.PrefetchScalarGridSpec(
            num_scalar_prefetch=0,
            grid=grid,
            in_specs=in_specs,
            out_specs=out_specs,
            scratch_shapes=[pltpu.VMEM((tn, O_pad), cdt)],
        ),
        compiler_params=pltpu.CompilerParams(
            dimension_semantics=("parallel", "parallel", "arbitrary"),
            vmem_limit_bytes=vmem_limit,
        ),
        cost_estimate=cost,
    )(scale, xc, w_p1c, b_p1c, w_p2c, b_p2c)

    if N_pad != N or O_pad != O:
        out = out[:, :N, :O]
    return out


def semlp_reference(x, w_se1, w_se2, w_p1, b_p1, w_p2, b_p2,
                    approximate_gelu=False):
    hp = lax.Precision.HIGHEST
    g = jnp.mean(x, axis=1, keepdims=True)
    gate = jax.nn.sigmoid(jnp.matmul(
        _gelu(jnp.matmul(g, w_se1, precision=hp), approximate_gelu),
        w_se2, precision=hp))
    xg = x * gate + x
    y = _gelu(jnp.matmul(xg, w_p1, precision=hp) + b_p1, approximate_gelu)
    return jnp.matmul(y, w_p2, precision=hp) + b_p2


if __name__ == "__main__":
    # Small deterministic shapes consistent with the module:
    # batch=2, tokens=8, in_channels=32, out_channels=64.
    B, N, C, O = 2, 8, 32, 64
    key = jax.random.PRNGKey(0)
    kx, k1, k2, k3, k4, k5, k6 = jax.random.split(key, 7)

    x     = jax.random.normal(kx, (B, N, C), dtype=jnp.float32)
    w_se1 = jax.random.normal(k1, (C, C), dtype=jnp.float32) * 0.1
    w_se2 = jax.random.normal(k2, (C, C), dtype=jnp.float32) * 0.1
    w_p1  = jax.random.normal(k3, (C, O), dtype=jnp.float32) * 0.1
    b_p1  = jax.random.normal(k4, (1, O), dtype=jnp.float32) * 0.1
    w_p2  = jax.random.normal(k5, (O, O), dtype=jnp.float32) * 0.1
    b_p2  = jax.random.normal(k6, (1, O), dtype=jnp.float32) * 0.1

    ref = semlp_reference(x, w_se1, w_se2, w_p1, b_p1, w_p2, b_p2)

    # 1) PyTorch-parity path: fp32 compute + exact erf GELU, tight tolerance.
    out = semlp_pallas(x, w_se1, w_se2, w_p1, b_p1, w_p2, b_p2,
                       compute_dtype=jnp.float32, approximate_gelu=False)
    out = jax.block_until_ready(out)
    assert out.shape == (B, N, O), out.shape
    assert jnp.allclose(out, ref, atol=1e-4, rtol=1e-4), "fp32 mismatch vs reference"

    # 2) Default performance path: bf16 MXU inputs (f32 accumulation) + tanh
    #    GELU, compared loosely against the fp32 reference.
    out_fast = semlp_pallas(x, w_se1, w_se2, w_p1, b_p1, w_p2, b_p2)
    out_fast = jax.block_until_ready(out_fast)
    assert out_fast.shape == (B, N, O), out_fast.shape
    assert jnp.allclose(out_fast.astype(jnp.float32), ref, atol=1e-1, rtol=1e-1), \
        "bf16 fast path diverged from reference"

    # 3) Exercise the production code paths at small scale: streamed W_p2
    #    column tiles (forced via tile_o), chunked first-layer matmul, and
    #    token tiling with padding of a non-divisible token count.
    B3, N3, C3, O3 = 2, 23, 32, 256
    kx3, k13, k23, k33, k43, k53, k63 = jax.random.split(jax.random.PRNGKey(1), 7)
    x3     = jax.random.normal(kx3, (B3, N3, C3), dtype=jnp.float32)
    w_se13 = jax.random.normal(k13, (C3, C3), dtype=jnp.float32) * 0.1
    w_se23 = jax.random.normal(k23, (C3, C3), dtype=jnp.float32) * 0.1
    w_p13  = jax.random.normal(k33, (C3, O3), dtype=jnp.float32) * 0.1
    b_p13  = jax.random.normal(k43, (1, O3), dtype=jnp.float32) * 0.1
    w_p23  = jax.random.normal(k53, (O3, O3), dtype=jnp.float32) * 0.1
    b_p23  = jax.random.normal(k63, (1, O3), dtype=jnp.float32) * 0.1
    ref3 = semlp_reference(x3, w_se13, w_se23, w_p13, b_p13, w_p23, b_p23)
    out3 = semlp_pallas(x3, w_se13, w_se23, w_p13, b_p13, w_p23, b_p23,
                        compute_dtype=jnp.float32, approximate_gelu=False,
                        tile_n=16, tile_o=128, first_layer_chunk=128)
    out3 = jax.block_until_ready(out3)
    assert out3.shape == (B3, N3, O3), out3.shape
    assert jnp.allclose(out3, ref3, atol=1e-4, rtol=1e-4), \
        "streamed/chunked path mismatch vs reference"

    print("KERNEL_OK")
</pallas_src>

<mosaic_0001>
module attributes {stable_mosaic.version = 11 : i64} {
  func.func @_semlp_kernel(%arg0: i32, %arg1: i32, %arg2: i32, %arg3: memref<1x1x32xf32, #tpu.memory_space<vmem>>, %arg4: memref<1x8x32xf32, #tpu.memory_space<vmem>>, %arg5: memref<32x128xf32, #tpu.memory_space<vmem>>, %arg6: memref<1x128xf32, #tpu.memory_space<vmem>>, %arg7: memref<128x128xf32, #tpu.memory_space<vmem>>, %arg8: memref<1x128xf32, #tpu.memory_space<vmem>>, %arg9: memref<1x8x128xf32, #tpu.memory_space<vmem>>, %arg10: memref<8x128xf32, #tpu.memory_space<vmem>>) attributes {dimension_semantics = [#tpu.dimension_semantics<parallel>, #tpu.dimension_semantics<parallel>, #tpu.dimension_semantics<arbitrary>], iteration_bounds = array<i64: 2, 1, 1>, scalar_prefetch = 0 : i64, scratch_operands = 1 : i64, tpu.core_type = #tpu.core_type<tc>, window_params = [{transform_indices = @transform_0, window_bounds = array<i64: 1, 1, 32>}, {transform_indices = @transform_1, window_bounds = array<i64: 1, 8, 32>}, {pipeline_mode = #tpu.pipeline_mode<synchronous>, transform_indices = @transform_2, window_bounds = array<i64: 32, 128>}, {pipeline_mode = #tpu.pipeline_mode<synchronous>, transform_indices = @transform_3, window_bounds = array<i64: 1, 128>}, {pipeline_mode = #tpu.pipeline_mode<synchronous>, transform_indices = @transform_4, window_bounds = array<i64: 128, 128>}, {pipeline_mode = #tpu.pipeline_mode<synchronous>, transform_indices = @transform_5, window_bounds = array<i64: 1, 128>}, {transform_indices = @transform_6, window_bounds = array<i64: 1, 8, 128>}]} {
    %c0_i32 = arith.constant 0 : i32
    %0 = arith.cmpi eq, %arg2, %c0_i32 : i32
    %1 = arith.extui %0 : i1 to i32
    %c0_i32_0 = arith.constant 0 : i32
    %2 = arith.cmpi ne, %1, %c0_i32_0 : i32
    scf.if %2 {
      %c0_9 = arith.constant 0 : index
      %c0_10 = arith.constant 0 : index
      %c0_11 = arith.constant 0 : index
      %12 = vector.load %arg4[%c0_9, %c0_10, %c0_11] : memref<1x8x32xf32, #tpu.memory_space<vmem>>, vector<1x8x32xf32>
      %13 = vector.shape_cast %12 : vector<1x8x32xf32> to vector<8x32xf32>
      %c0_12 = arith.constant 0 : index
      %c0_13 = arith.constant 0 : index
      %c0_14 = arith.constant 0 : index
      %14 = vector.load %arg3[%c0_12, %c0_13, %c0_14] : memref<1x1x32xf32, #tpu.memory_space<vmem>>, vector<1x1x32xf32>
      %15 = vector.shape_cast %14 : vector<1x1x32xf32> to vector<1x32xf32>
      %16 = vector.broadcast %15 : vector<1x32xf32> to vector<8x32xf32>
      %17 = arith.mulf %13, %16 : vector<8x32xf32>
      %c0_15 = arith.constant 0 : index
      %c0_16 = arith.constant 0 : index
      %18 = vector.load %arg5[%c0_15, %c0_16] : memref<32x128xf32, #tpu.memory_space<vmem>>, vector<32x128xf32>
      %cst_17 = arith.constant dense<0.000000e+00> : vector<8x128xf32>
      %19 = tpu.matmul %17, %18, %cst_17 {dimension_numbers = #tpu.dot_dimension_numbers<[1], [0], [0], [1], [0, 0, 1, 1], [], []>} : vector<8x32xf32>, vector<32x128xf32>, vector<8x128xf32> -> vector<8x128xf32>
      %c0_18 = arith.constant 0 : index
      %c0_19 = arith.constant 0 : index
      %20 = vector.load %arg6[%c0_18, %c0_19] : memref<1x128xf32, #tpu.memory_space<vmem>>, vector<1x128xf32>
      %21 = vector.broadcast %20 : vector<1x128xf32> to vector<8x128xf32>
      %22 = arith.addf %19, %21 : vector<8x128xf32>
      %cst_20 = arith.constant 5.000000e-01 : f32
      %23 = vector.broadcast %cst_20 : f32 to vector<8x128xf32>
      %24 = arith.mulf %23, %22 : vector<8x128xf32>
      %cst_21 = arith.constant 0.707106769 : f32
      %25 = vector.broadcast %cst_21 : f32 to vector<8x128xf32>
      %26 = arith.mulf %22, %25 : vector<8x128xf32>
      %27 = math.erf %26 : vector<8x128xf32>
      %cst_22 = arith.constant 1.000000e+00 : f32
      %28 = vector.broadcast %cst_22 : f32 to vector<8x128xf32>
      %29 = arith.addf %28, %27 : vector<8x128xf32>
      %30 = arith.mulf %24, %29 : vector<8x128xf32>
      %c0_23 = arith.constant 0 : index
      %c0_24 = arith.constant 0 : index
      %31 = vector.load %arg10[%c0_23, %c0_24] : memref<8x128xf32, #tpu.memory_space<vmem>>, vector<8x128xf32>
      tpu.vector_store %arg10[%c0_23, %c0_24], %30 {strides = array<i32>} : memref<8x128xf32, #tpu.memory_space<vmem>>, vector<8x128xf32>,
    } else {
    }
    %c0 = arith.constant 0 : index
    %c0_1 = arith.constant 0 : index
    %3 = vector.load %arg10[%c0, %c0_1] : memref<8x128xf32, #tpu.memory_space<vmem>>, vector<8x128xf32>
    %c0_2 = arith.constant 0 : index
    %c0_3 = arith.constant 0 : index
    %4 = vector.load %arg7[%c0_2, %c0_3] : memref<128x128xf32, #tpu.memory_space<vmem>>, vector<128x128xf32>
    %cst = arith.constant dense<0.000000e+00> : vector<8x128xf32>
    %5 = tpu.matmul %3, %4, %cst {dimension_numbers = #tpu.dot_dimension_numbers<[1], [0], [0], [1], [0, 0, 1, 1], [], []>} : vector<8x128xf32>, vector<128x128xf32>, vector<8x128xf32> -> vector<8x128xf32>
    %c0_4 = arith.constant 0 : index
    %c0_5 = arith.constant 0 : index
    %6 = vector.load %arg8[%c0_4, %c0_5] : memref<1x128xf32, #tpu.memory_space<vmem>>, vector<1x128xf32>
    %7 = vector.broadcast %6 : vector<1x128xf32> to vector<8x128xf32>
    %8 = arith.addf %5, %7 : vector<8x128xf32>
    %c0_6 = arith.constant 0 : index
    %c0_7 = arith.constant 0 : index
    %c0_8 = arith.constant 0 : index
    %9 = vector.load %arg9[%c0_6, %c0_7, %c0_8] : memref<1x8x128xf32, #tpu.memory_space<vmem>>, vector<1x8x128xf32>
    %10 = vector.shape_cast %9 : vector<1x8x128xf32> to vector<8x128xf32>
    %11 = vector.shape_cast %8 : vector<8x128xf32> to vector<1x8x128xf32>
    tpu.vector_store %arg9[%c0_6, %c0_7, %c0_8], %11 {strides = array<i32>} : memref<1x8x128xf32, #tpu.memory_space<vmem>>, vector<1x8x128xf32>,
    return
  }
  func.func @transform_0(%arg0: i32, %arg1: i32, %arg2: i32) -> (i32, i32, i32) {
    %c0_i32 = arith.constant 0 : i32
    %c0_i32_0 = arith.constant 0 : i32
    %c0_i32_1 = arith.constant 0 : i32
    return %arg0, %c0_i32, %c0_i32_0 : i32, i32, i32
  }
  func.func @transform_1(%arg0: i32, %arg1: i32, %arg2: i32) -> (i32, i32, i32) {
    %c0_i32 = arith.constant 0 : i32
    %c0_i32_0 = arith.constant 0 : i32
    return %arg0, %arg1, %c0_i32 : i32, i32, i32
  }
  func.func @transform_2(%arg0: i32, %arg1: i32, %arg2: i32) -> (i32, i32) {
    %c0_i32 = arith.constant 0 : i32
    %c0_i32_0 = arith.constant 0 : i32
    %c0_i32_1 = arith.constant 0 : i32
    return %c0_i32, %c0_i32_0 : i32, i32
  }
  func.func @transform_3(%arg0: i32, %arg1: i32, %arg2: i32) -> (i32, i32) {
    %c0_i32 = arith.constant 0 : i32
    %c0_i32_0 = arith.constant 0 : i32
    %c0_i32_1 = arith.constant 0 : i32
    return %c0_i32, %c0_i32_0 : i32, i32
  }
  func.func @transform_4(%arg0: i32, %arg1: i32, %arg2: i32) -> (i32, i32) {
    %c0_i32 = arith.constant 0 : i32
    %c0_i32_0 = arith.constant 0 : i32
    return %c0_i32, %arg2 : i32, i32
  }
  func.func @transform_5(%arg0: i32, %arg1: i32, %arg2: i32) -> (i32, i32) {
    %c0_i32 = arith.constant 0 : i32
    %c0_i32_0 = arith.constant 0 : i32
    return %c0_i32, %arg2 : i32, i32
  }
  func.func @transform_6(%arg0: i32, %arg1: i32, %arg2: i32) -> (i32, i32, i32) {
    %c0_i32 = arith.constant 0 : i32
    return %arg0, %arg1, %arg2 : i32, i32, i32
  }
}

</mosaic_0001>

<llo_original>
// kernel: tpu_custom_call.1
$region0: #{tpu_custom_call.1}
  #allocation0 [shape = 'u32[]', space=smem, size = 0x4, offset = 0x4, fixed_abs, tag = 'smem constant byte address 0x4 - core index']
  #allocation1 [shape = 'u32[144,128]{1,0:T(1,128)}', space=vmem, size = 0x12000, scoped, tag = 'internal scratch']
  #allocation2 [shape = 'f32[8,128]{1,0:T(8,128)}', space=vmem, size = 0x1000, scoped, tag = 'scratch operand']
  %s0 = inlined_call_operand.hbm [shape: f32[2,1,32], index: 0, kind: input, shape index: {}]
  %s1 = inlined_call_operand.hbm [shape: f32[2,8,32], index: 1, kind: input, shape index: {}]
  %s2 = inlined_call_operand.hbm [shape: f32[32,128], index: 2, kind: input, shape index: {}]
  %s3 = inlined_call_operand.vmem [shape: f32[1,128], index: 3, kind: input, shape index: {}]
  %s4 = inlined_call_operand.hbm [shape: f32[128,128], index: 4, kind: input, shape index: {}]
  %s5 = inlined_call_operand.vmem [shape: f32[1,128], index: 5, kind: input, shape index: {}]
  %s6 = inlined_call_operand.hbm [shape: f32[2,8,128], index: 6, kind: output, shape index: {}]
  %s7 = sld [smem:[#allocation0]]
  $region77: #{tpu_custom_call.1} parent=0
    _
  %s9 = ssub.s32 1, %s7
  %s10 = scalar_select 0, %s9, %s7
  $region1: #{tpu_custom_call.1} parent=0
    #allocation3 [shape = 'u8[1024]{0}', space=vmem, size = 0x400, scoped, tag = 'input window, operand 0']
    #allocation4 [shape = 's32[2]{0}', space=sflag, size = 0x8, scoped, tag = 'scoped memory for tpu_custom_call.1']
    #allocation5 [shape = 's32[2]{0}', space=sflag, size = 0x8, scoped, tag = 'scoped memory for tpu_custom_call.1']
    #allocation6 [shape = 'u8[8192]{0}', space=vmem, size = 0x2000, scoped, tag = 'input window, operand 1']
    #allocation7 [shape = 's32[2]{0}', space=sflag, size = 0x8, scoped, tag = 'scoped memory for tpu_custom_call.1']
    #allocation8 [shape = 'u8[16384]{0}', space=vmem, size = 0x4000, scoped, tag = 'input window, operand 2, single buffered']
    #allocation9 [shape = 'u8[65536]{0}', space=vmem, size = 0x10000, scoped, tag = 'input window, operand 4, single buffered']
    #allocation10 [shape = 's32[1]{0}', space=sflag, size = 0x4, scoped, tag = 'scoped memory for tpu_custom_call.1']
    #allocation11 [shape = 'u8[8192]{0}', space=vmem, size = 0x2000, scoped, tag = 'output window, operand 0']
    %11 = vsyncpa [#allocation4], 0
    %s12 = scalar_lea.sflag [#allocation4], 1
    %13 = vsyncpa %s12, 0
    %14 = vsyncpa [#allocation7], 0
    %s15 = scalar_lea.sflag [#allocation7], 1
    %16 = vsyncpa %s15, 0
    %17 = vsyncpa [#allocation10], 0
    %18 = vsyncpa [#allocation5], 0
    %s19 = scalar_lea.sflag [#allocation5], 1
    %20 = vsyncpa %s19, 0
    loop: start=0, step=1, limit=4
    $region2: #{tpu_custom_call.1} parent=1 // loop_pre_header
      _
    $region3: #{tpu_custom_call.1} parent=1 // loop_header
      %s22 = sphi 0, %s26
      %p23 = scmp.ge.s32.totalorder %s22, 4
      %s29 = sphi 0, %s48
      %s30 = sphi 0, %s44
      %s31 = sphi 0, %s40
      %s32 = sphi 0, %s29
      %s33 = sphi 0, %s30
      %s34 = sphi 0, %s31
      %s35 = sphi 0, %s32
      %s36 = sphi 0, %s33
      %s37 = sphi 0, %s34
      %s51 = sphi 0, %s53
      %s54 = sphi 0, %s51
      %s55 = sphi 0, %s54
      %s71 = sphi 0, %s55
      %s79 = sphi 0, %s81
      %s82 = sphi 0, %s79
      %s83 = sphi 0, %s82
      %s99 = sphi 0, %s83
      %s103 = sphi 0, %s103
      %s105 = sphi 0, %s103
      %s106 = sphi 0, %s105
      %s120 = sphi 0, %s106
      %s124 = sphi 0, %s124
      %s126 = sphi 0, %s124
      %s127 = sphi 0, %s126
      %s141 = sphi 0, %s127
      %s147 = sphi 0, %s149
      %s150 = sphi 0, %s147
      %s151 = sphi 0, %s150
      %s167 = sphi 0, %s151
      %s173 = sphi 0, %s175
      %s176 = sphi 0, %s173
      %s177 = sphi 0, %s176
      %s193 = sphi 0, %s177
      %s203 = sphi 0, %s205
      %s206 = sphi 0, %s203
      %s207 = sphi 0, %s206
      %s223 = sphi 0, %s207
    $region4: #{tpu_custom_call.1} parent=1 // loop_header_branch
      %25 = sbr.rel (%p23) target = $region8
    $region5: #{tpu_custom_call.1} parent=1 // loop_body
      %s27 = ssub.s32 %s22, 1
      %s28 = ssub.s32 %s22, 2
      %s38 = sadd.s32 1, %s31
      %p39 = scmp.ge.s32.totalorder %s38, 1
      %s40 = scalar_select %p39, 0, %s38
      %s41 = sadd.s32 1, %s30
      %s42 = scalar_select %p39, %s41, %s30
      %p43 = scmp.ge.s32.totalorder %s42, 1
      %s44 = scalar_select %p43, 0, %s42
      %s45 = sadd.s32 1, %s29
      %s46 = scalar_select %p43, %s45, %s29
      %p47 = scmp.ge.s32.totalorder %s46, 2
      %s48 = scalar_select %p47, 0, %s46
      %s49 = ssub.s32 %s29, %s48
      %p50 = scmp.eq.s32.totalorder %s49, 0
      %s52 = sadd.s32 %s51, 1
      %s53 = scalar_select %p50, %s51, %s52
      %p56 = pneg %p50
      %p57 = scmp.eq.s32.totalorder %s22, 1
      %p58 = por %p56, %p57
      %p59 = scmp.ne.s32.totalorder %s51, %s54
      %p60 = scmp.eq.s32.totalorder %s22, 0
      %p61 = por %p59, %p60
      %p62 = scmp.ne.s32.totalorder %s51, %s54
      %p63 = scmp.eq.s32.totalorder %s27, 1
      %p64 = por %p62, %p63
      %p65 = scmp.ne.s32.totalorder %s54, %s55
      %p66 = scmp.eq.s32.totalorder %s27, 0
      %p67 = por %p65, %p66
      %p68 = scmp.ne.s32.totalorder %s54, %s55
      %p69 = scmp.eq.s32.totalorder %s28, 1
      %p70 = por %p68, %p69
      %p72 = scmp.ne.s32.totalorder %s55, %s71
      %p73 = scmp.eq.s32.totalorder %s28, 0
      %p74 = por %p72, %p73
      %s75 = ssub.s32 %s29, %s48
      %s76 = ssub.s32 %s30, %s44
      %s77 = sor.u32 %s75, %s76
      %p78 = scmp.eq.s32.totalorder %s77, 0
      %s80 = sadd.s32 %s79, 1
      %s81 = scalar_select %p78, %s79, %s80
      %p84 = pneg %p78
      %p85 = scmp.eq.s32.totalorder %s22, 1
      %p86 = por %p84, %p85
      %p87 = scmp.ne.s32.totalorder %s79, %s82
      %p88 = scmp.eq.s32.totalorder %s22, 0
      %p89 = por %p87, %p88
      %p90 = scmp.ne.s32.totalorder %s79, %s82
      %p91 = scmp.eq.s32.totalorder %s27, 1
      %p92 = por %p90, %p91
      %p93 = scmp.ne.s32.totalorder %s82, %s83
      %p94 = scmp.eq.s32.totalorder %s27, 0
      %p95 = por %p93, %p94
      %p96 = scmp.ne.s32.totalorder %s82, %s83
      %p97 = scmp.eq.s32.totalorder %s28, 1
      %p98 = por %p96, %p97
      %p100 = scmp.ne.s32.totalorder %s83, %s99
      %p101 = scmp.eq.s32.totalorder %s28, 0
      %p102 = por %p100, %p101
      %s104 = sadd.s32 %s103, 1
      %p107 = scmp.eq.s32.totalorder %s22, 1
      %p108 = scmp.ne.s32.totalorder %s103, %s105
      %p109 = scmp.eq.s32.totalorder %s22, 0
      %p110 = por %p108, %p109
      %p111 = scmp.ne.s32.totalorder %s103, %s105
      %p112 = scmp.eq.s32.totalorder %s27, 1
      %p113 = por %p111, %p112
      %p114 = scmp.ne.s32.totalorder %s105, %s106
      %p115 = scmp.eq.s32.totalorder %s27, 0
      %p116 = por %p114, %p115
      %p117 = scmp.ne.s32.totalorder %s105, %s106
      %p118 = scmp.eq.s32.totalorder %s28, 1
      %p119 = por %p117, %p118
      %p121 = scmp.ne.s32.totalorder %s106, %s120
      %p122 = scmp.eq.s32.totalorder %s28, 0
      %p123 = por %p121, %p122
      %s125 = sadd.s32 %s124, 1
      %p128 = scmp.eq.s32.totalorder %s22, 1
      %p129 = scmp.ne.s32.totalorder %s124, %s126
      %p130 = scmp.eq.s32.totalorder %s22, 0
      %p131 = por %p129, %p130
      %p132 = scmp.ne.s32.totalorder %s124, %s126
      %p133 = scmp.eq.s32.totalorder %s27, 1
      %p134 = por %p132, %p133
      %p135 = scmp.ne.s32.totalorder %s126, %s127
      %p136 = scmp.eq.s32.totalorder %s27, 0
      %p137 = por %p135, %p136
      %p138 = scmp.ne.s32.totalorder %s126, %s127
      %p139 = scmp.eq.s32.totalorder %s28, 1
      %p140 = por %p138, %p139
      %p142 = scmp.ne.s32.totalorder %s127, %s141
      %p143 = scmp.eq.s32.totalorder %s28, 0
      %p144 = por %p142, %p143
      %s145 = ssub.s32 %s31, %s40
      %p146 = scmp.eq.s32.totalorder %s145, 0
      %s148 = sadd.s32 %s147, 1
      %s149 = scalar_select %p146, %s147, %s148
      %p152 = pneg %p146
      %p153 = scmp.eq.s32.totalorder %s22, 1
      %p154 = por %p152, %p153
      %p155 = scmp.ne.s32.totalorder %s147, %s150
      %p156 = scmp.eq.s32.totalorder %s22, 0
      %p157 = por %p155, %p156
      %p158 = scmp.ne.s32.totalorder %s147, %s150
      %p159 = scmp.eq.s32.totalorder %s27, 1
      %p160 = por %p158, %p159
      %p161 = scmp.ne.s32.totalorder %s150, %s151
      %p162 = scmp.eq.s32.totalorder %s27, 0
      %p163 = por %p161, %p162
      %p164 = scmp.ne.s32.totalorder %s150, %s151
      %p165 = scmp.eq.s32.totalorder %s28, 1
      %p166 = por %p164, %p165
      %p168 = scmp.ne.s32.totalorder %s151, %s167
      %p169 = scmp.eq.s32.totalorder %s28, 0
      %p170 = por %p168, %p169
      %s171 = ssub.s32 %s31, %s40
      %p172 = scmp.eq.s32.totalorder %s171, 0
      %s174 = sadd.s32 %s173, 1
      %s175 = scalar_select %p172, %s173, %s174
      %p178 = pneg %p172
      %p179 = scmp.eq.s32.totalorder %s22, 1
      %p180 = por %p178, %p179
      %p181 = scmp.ne.s32.totalorder %s173, %s176
      %p182 = scmp.eq.s32.totalorder %s22, 0
      %p183 = por %p181, %p182
      %p184 = scmp.ne.s32.totalorder %s173, %s176
      %p185 = scmp.eq.s32.totalorder %s27, 1
      %p186 = por %p184, %p185
      %p187 = scmp.ne.s32.totalorder %s176, %s177
      %p188 = scmp.eq.s32.totalorder %s27, 0
      %p189 = por %p187, %p188
      %p190 = scmp.ne.s32.totalorder %s176, %s177
      %p191 = scmp.eq.s32.totalorder %s28, 1
      %p192 = por %p190, %p191
      %p194 = scmp.ne.s32.totalorder %s177, %s193
      %p195 = scmp.eq.s32.totalorder %s28, 0
      %p196 = por %p194, %p195
      %s197 = ssub.s32 %s29, %s48
      %s198 = ssub.s32 %s30, %s44
      %s199 = sor.u32 %s197, %s198
      %s200 = ssub.s32 %s31, %s40
      %s201 = sor.u32 %s199, %s200
      %p202 = scmp.eq.s32.totalorder %s201, 0
      %s204 = sadd.s32 %s203, 1
      %s205 = scalar_select %p202, %s203, %s204
      %p208 = pneg %p202
      %p209 = scmp.eq.s32.totalorder %s22, 1
      %p210 = por %p208, %p209
      %p211 = scmp.ne.s32.totalorder %s203, %s206
      %p212 = scmp.eq.s32.totalorder %s22, 0
      %p213 = por %p211, %p212
      %p214 = scmp.ne.s32.totalorder %s203, %s206
      %p215 = scmp.eq.s32.totalorder %s27, 1
      %p216 = por %p214, %p215
      %p217 = scmp.ne.s32.totalorder %s206, %s207
      %p218 = scmp.eq.s32.totalorder %s27, 0
      %p219 = por %p217, %p218
      %p220 = scmp.ne.s32.totalorder %s206, %s207
      %p221 = scmp.eq.s32.totalorder %s28, 1
      %p222 = por %p220, %p221
      %p224 = scmp.ne.s32.totalorder %s207, %s223
      %p225 = scmp.eq.s32.totalorder %s28, 0
      %p226 = por %p224, %p225
      %p227 = scmp.le.s32.totalorder 1, %s22
      %p228 = scmp.lt.s32.totalorder %s22, 3
      %p229 = pnand %p227, %p228
      %p230 = pneg %p229
      // Predicated region
      $region9: #{tpu_custom_call.1} parent=5 // pred_check
        _
      $region10: #{tpu_custom_call.1} parent=5 // pred_check_branch
        %232 = sbr.rel (%p229) target = $region12
      $region11: #{tpu_custom_call.1} parent=5 // pred_region
        %s233 = ssub.s32 %s22, 1
        // Predicated region
        $region13: #{tpu_custom_call.1} parent=11 // pred_check
          %p234 = pneg %p116
        $region14: #{tpu_custom_call.1} parent=11 // pred_check_branch
          %236 = sbr.rel (%p234) target = $region16
        $region15: #{tpu_custom_call.1} parent=11 // pred_region
          %s238 = ssub.s32 512, 512
          %239 = vsyncadd [#allocation7], %s238
          %s240 = sshll.u32 [#allocation8], 4
          %s241 = int_to_ptr.vmem [resolvable:$true] %s240
          %246 = dma.hbm_to_vmem [thread:$0]  %s2, 512, %s241, [#allocation7], 128, 128, 8
        $region16: #{tpu_custom_call.1} parent=11 // pred_fallthru
          _
        // Predicated region
        $region17: #{tpu_custom_call.1} parent=11 // pred_check
          %p247 = pneg %p137
        $region18: #{tpu_custom_call.1} parent=11 // pred_check_branch
          %249 = sbr.rel (%p247) target = $region20
        $region19: #{tpu_custom_call.1} parent=11 // pred_region
          _
        $region20: #{tpu_custom_call.1} parent=11 // pred_fallthru
          _
        // Predicated region
        $region21: #{tpu_custom_call.1} parent=11 // pred_check
          %p250 = pneg %p163
        $region22: #{tpu_custom_call.1} parent=11 // pred_check_branch
          %252 = sbr.rel (%p250) target = $region24
        $region23: #{tpu_custom_call.1} parent=11 // pred_region
          %s254 = ssub.s32 2048, 2048
          %255 = vsyncadd [#allocation10], %s254
          %s256 = smul.addr %s34, 128
          %s257 = scalar_lea.hbm %s4, %s256
          %s258 = sshll.u32 [#allocation9], 4
          %s259 = int_to_ptr.vmem [resolvable:$true] %s258
          %264 = dma.hbm_to_vmem [thread:$0]  %s257, 2048, %s259, [#allocation10], 128, 128, 8
        $region24: #{tpu_custom_call.1} parent=11 // pred_fallthru
          _
        // Predicated region
        $region25: #{tpu_custom_call.1} parent=11 // pred_check
          %p265 = pneg %p189
        $region26: #{tpu_custom_call.1} parent=11 // pred_check_branch
          %267 = sbr.rel (%p265) target = $region28
        $region27: #{tpu_custom_call.1} parent=11 // pred_region
          %p268 = scmp.lt.s32.totalorder %s34, 0
          %s269 = scalar_select %p268, %s34, 0
          %s270 = scalar_lea.vmem %s5, %s269
        $region28: #{tpu_custom_call.1} parent=11 // pred_fallthru
          _
      $region12: #{tpu_custom_call.1} parent=5 // pred_fallthru
        _
      %p271 = scmp.lt.s32.totalorder %s22, 2
      // Predicated region
      $region29: #{tpu_custom_call.1} parent=5 // pred_check
        %p272 = pneg %p271
      $region30: #{tpu_custom_call.1} parent=5 // pred_check_branch
        %274 = sbr.rel (%p272) target = $region32
      $region31: #{tpu_custom_call.1} parent=5 // pred_region
        // Predicated region
        $region33: #{tpu_custom_call.1} parent=31 // pred_check
          %p275 = pneg %p61
        $region34: #{tpu_custom_call.1} parent=31 // pred_check_branch
          %277 = sbr.rel (%p275) target = $region36
        $region35: #{tpu_custom_call.1} parent=31 // pred_region
          %s278 = sand.u32 %s51, 1
          %s279 = scalar_lea.sflag [#allocation4], %s278
          %s280 = sand.u32 %s51, 1
          %s281 = scalar_lea.vmem [#allocation3], %s280
          %s283 = ssub.s32 16, 16
          %284 = vsyncadd %s279, %s283
          %s285 = smul.addr %s29, 16
          %s286 = scalar_lea.hbm %s0, %s285
          %s288 = sshll.u32 %s281, 4
          %s289 = int_to_ptr.vmem [resolvable:$true] %s288
          %291 = dma.hbm_to_vmem [thread:$0]  %s286, 16, %s289, %s279
        $region36: #{tpu_custom_call.1} parent=31 // pred_fallthru
          _
        // Predicated region
        $region37: #{tpu_custom_call.1} parent=31 // pred_check
          %p292 = pneg %p89
        $region38: #{tpu_custom_call.1} parent=31 // pred_check_branch
          %294 = sbr.rel (%p292) target = $region40
        $region39: #{tpu_custom_call.1} parent=31 // pred_region
          %s295 = sand.u32 %s22, 1
          %s296 = scalar_lea.sflag [#allocation7], %s295
          %s297 = sand.u32 %s79, 1
          %s298 = smul.addr %s297, 8
          %s299 = scalar_lea.vmem [#allocation6], %s298
          %s301 = ssub.s32 128, 128
          %302 = vsyncadd %s296, %s301
          %s303 = sadd.s32 %s30, %s29
          %s304 = smul.addr %s303, 128
          %s305 = scalar_lea.hbm %s1, %s304
          %s307 = sshll.u32 %s299, 4
          %s308 = int_to_ptr.vmem [resolvable:$true] %s307
          %310 = dma.hbm_to_vmem [thread:$0]  %s305, 128, %s308, %s296
        $region40: #{tpu_custom_call.1} parent=31 // pred_fallthru
          _
      $region32: #{tpu_custom_call.1} parent=5 // pred_fallthru
        _
      %p311 = scmp.le.s32.totalorder 1, %s22
      %p312 = scmp.lt.s32.totalorder %s22, 3
      %p313 = pnand %p311, %p312
      %p314 = pneg %p313
      // Predicated region
      $region41: #{tpu_custom_call.1} parent=5 // pred_check
        _
      $region42: #{tpu_custom_call.1} parent=5 // pred_check_branch
        %316 = sbr.rel (%p313) target = $region44
      $region43: #{tpu_custom_call.1} parent=5 // pred_region
        %s317 = ssub.s32 %s22, 1
        %s318 = sand.u32 %s54, 1
        %s319 = scalar_lea.sflag [#allocation4], %s318
        %s320 = sand.u32 %s54, 1
        %s321 = scalar_lea.vmem [#allocation3], %s320
        // Predicated region
        $region45: #{tpu_custom_call.1} parent=43 // pred_check
          %p322 = pneg %p67
        $region46: #{tpu_custom_call.1} parent=43 // pred_check_branch
          %324 = sbr.rel (%p322) target = $region48
        $region47: #{tpu_custom_call.1} parent=43 // pred_region
          %325 = dma.done %s319, 16
        $region48: #{tpu_custom_call.1} parent=43 // pred_fallthru
          _
        %s326 = sand.u32 %s27, 1
        %s327 = scalar_lea.sflag [#allocation7], %s326
        %s328 = sand.u32 %s82, 1
        %s329 = smul.addr %s328, 8
        %s330 = scalar_lea.vmem [#allocation6], %s329
        // Predicated region
        $region49: #{tpu_custom_call.1} parent=43 // pred_check
          %p331 = pneg %p95
        $region50: #{tpu_custom_call.1} parent=43 // pred_check_branch
          %333 = sbr.rel (%p331) target = $region52
        $region51: #{tpu_custom_call.1} parent=43 // pred_region
          %334 = dma.done %s327, 128
        $region52: #{tpu_custom_call.1} parent=43 // pred_fallthru
          _
        // Predicated region
        $region53: #{tpu_custom_call.1} parent=43 // pred_check
          %p335 = pneg %p116
        $region54: #{tpu_custom_call.1} parent=43 // pred_check_branch
          %337 = sbr.rel (%p335) target = $region56
        $region55: #{tpu_custom_call.1} parent=43 // pred_region
          %338 = dma.done [#allocation7], 512
        $region56: #{tpu_custom_call.1} parent=43 // pred_fallthru
          _
        // Predicated region
        $region57: #{tpu_custom_call.1} parent=43 // pred_check
          %p339 = pneg %p163
        $region58: #{tpu_custom_call.1} parent=43 // pred_check_branch
          %341 = sbr.rel (%p339) target = $region60
        $region59: #{tpu_custom_call.1} parent=43 // pred_region
          %342 = dma.done [#allocation10], 2048
        $region60: #{tpu_custom_call.1} parent=43 // pred_fallthru
          _
        %s343 = sand.u32 %s54, 1
        %s344 = scalar_lea.sflag [#allocation4], %s343
        %s345 = sand.u32 %s54, 1
        %s346 = scalar_lea.vmem [#allocation3], %s345
        %p347 = pneg %p67
        %p348 = pneg %p64
        %s349 = sand.u32 %s27, 1
        %s350 = scalar_lea.sflag [#allocation7], %s349
        %s351 = sand.u32 %s82, 1
        %s352 = smul.addr %s351, 8
        %s353 = scalar_lea.vmem [#allocation6], %s352
        %p354 = pneg %p95
        %p355 = pneg %p92
        %p356 = pneg %p116
        %p357 = pneg %p113
        %p358 = pneg %p137
        %p359 = pneg %p134
        %p360 = pneg %p163
        %p361 = pneg %p160
        %p362 = scmp.lt.s32.totalorder %s34, 0
        %s363 = scalar_select %p362, %s34, 0
        %s364 = scalar_lea.vmem %s5, %s363
        %p365 = pneg %p189
        %p366 = pneg %p186
        %p367 = pneg %p219
        %p368 = pneg %p216
        %s369 = sand.u32 %s206, 1
        %s370 = scalar_lea.sflag [#allocation5], %s369
        %s371 = sand.u32 %s206, 1
        %s372 = smul.addr %s371, 8
        %s373 = scalar_lea.vmem [#allocation11], %s372
        %p374 = scmp.lt.s32.totalorder %s34, 0
        %s375 = scalar_select %p374, %s34, 0
        %s376 = scalar_lea.vmem %s5, %s375
        %p377 = scmp.eq.s32.totalorder %s34, 0
        // Predicated region
        $region61: #{tpu_custom_call.1} parent=43 // pred_check
          %p378 = pneg %p377
        $region62: #{tpu_custom_call.1} parent=43 // pred_check_branch
          %380 = sbr.rel (%p378) target = $region64
        $region63: #{tpu_custom_call.1} parent=43 // pred_region
          %v381 = vld [vmem:[%s330] sm:$0xff]
          %v382 = vld [vmem:[%s321] sm:$0x1]
          %v384 = vlaneseq
          %v385 = vshrl.u32 %v384, 7
          %v386 = vsub.s32 0, %v385
          %v387 = vrot.slane %v382, %v386
          %v389 = vmul.f32 %v381, %v387
          %v390 = vld [vmem:[#allocation8] sm:$0xff]
          %v391 = vld [vmem:[#allocation8 + $0x8] sm:$0xff]
          %v392 = vld [vmem:[#allocation8 + $0x10] sm:$0xff]
          %v393 = vld [vmem:[#allocation8 + $0x18] sm:$0xff]
          %v394 = vld [vmem:[%s3] sm:$0x1]
          %v396 = vlaneseq
          %v397 = vshrl.u32 %v396, 7
          %v398 = vsub.s32 0, %v397
          %v399 = vrot.slane %v394, %v398
          %vm401 = vcmask 261120
          %v403 = vsel %vm401, %v389, 0
          %405 = vmatprep.subr.mxu0 0.0
          %406 = vmatpush1.msra.mxu0 0.0
          %407 = vmatprep.subr.mxu0 0.0
          %408 = vmatpush1.msra.mxu0 0.0
          %409 = vmatprep.subr.mxu0 0.0
          %410 = vmatpush1.msra.mxu0 0.0
          %411 = vmatprep.subr.mxu0 0.0
          %412 = vmatpush1.msra.mxu0 0.0
          %413 = vmatprep.subr.mxu0 0.0
          %414 = vmatpush1.msra.mxu0 0.0
          %415 = vmatprep.subr.mxu0 0.0
          %416 = vmatpush1.msra.mxu0 0.0
          %417 = vmatprep.subr.mxu0 0.0
          %418 = vmatpush1.msra.mxu0 0.0
          %419 = vmatprep.subr.mxu0 0.0
          %420 = vmatpush1.msra.mxu0 0.0
          %421 = vmatprep.subr.mxu0 0.0
          %422 = vmatpush1.msra.mxu0 0.0
          %423 = vmatprep.subr.mxu0 0.0
          %424 = vmatpush1.msra.mxu0 0.0
          %425 = vmatprep.subr.mxu0 0.0
          %426 = vmatpush1.msra.mxu0 0.0
          %427 = vmatprep.subr.mxu0 0.0
          %428 = vmatpush1.msra.mxu0 0.0
          %429 = vmatprep.subr.mxu0 0.0
          %430 = vmatpush1.msra.mxu0 %v393
          %431 = vmatprep.subr.mxu0 0.0
          %432 = vmatpush1.msra.mxu0 %v392
          %433 = vmatprep.subr.mxu0 0.0
          %434 = vmatpush1.msra.mxu0 %v391
          %435 = vmatprep.subr.mxu0 0.0
          %436 = vmatpush1.msra.mxu0 %v390
          %437 = vmatprep.subr.mxu0 0.0
          %438 = vmatpush2.msra.mxu0 0.0
          %439 = vmatprep.subr.mxu0 0.0
          %440 = vmatpush2.msra.mxu0 0.0
          %441 = vmatprep.subr.mxu0 0.0
          %442 = vmatpush2.msra.mxu0 0.0
          %443 = vmatprep.subr.mxu0 0.0
          %444 = vmatpush2.msra.mxu0 0.0
          %445 = vmatprep.subr.mxu0 0.0
          %446 = vmatpush2.msra.mxu0 0.0
          %447 = vmatprep.subr.mxu0 0.0
          %448 = vmatpush2.msra.mxu0 0.0
          %449 = vmatprep.subr.mxu0 0.0
          %450 = vmatpush2.msra.mxu0 0.0
          %451 = vmatprep.subr.mxu0 0.0
          %452 = vmatpush2.msra.mxu0 0.0
          %453 = vmatprep.subr.mxu0 0.0
          %454 = vmatpush2.msra.mxu0 0.0
          %455 = vmatprep.subr.mxu0 0.0
          %456 = vmatpush2.msra.mxu0 0.0
          %457 = vmatprep.subr.mxu0 0.0
          %458 = vmatpush2.msra.mxu0 0.0
          %459 = vmatprep.subr.mxu0 0.0
          %460 = vmatpush2.msra.mxu0 0.0
          %461 = vmatprep.subr.mxu0 0.0
          %462 = vmatpush2.msra.mxu0 0.0
          %463 = vmatprep.subr.mxu0 0.0
          %464 = vmatpush2.msra.mxu0 0.0
          %465 = vmatprep.subr.mxu0 0.0
          %466 = vmatpush2.msra.mxu0 0.0
          %467 = vmatprep.subr.mxu0 0.0
          %468 = vmatpush2.msra.mxu0 0.0
          %469 = vmatprep.mubr.f32.mxu0 0.0
          %470 = vmatmul.mubr.f32.gmra.mxu0 %v403
          %v471 = vpop.f32.mrf.mxu0
          %v472 = vadd.f32 %v399, %v471
          %v473 = vpop.f32.mrf.mxu0
          %474 = vdwg.mxu0
          %v475 = vmul.f32 %v472, 0.5
          %v476 = vmul.f32 %v472, 0.70710677
          %v477 = verf.f32.pop %v476
          %v478 = vadd.f32 %v477, 1.0
          %v479 = vmul.f32 %v475, %v478
          %480 = vst [vmem:[#allocation2] sm:$0xff] %v479
        $region64: #{tpu_custom_call.1} parent=43 // pred_fallthru
          _
        %v481 = vld [vmem:[#allocation2] sm:$0xff]
        %v482 = vld [vmem:[#allocation9] sm:$0xff]
        %v483 = vld [vmem:[#allocation9 + $0x8] sm:$0xff]
        %v484 = vld [vmem:[#allocation9 + $0x10] sm:$0xff]
        %v485 = vld [vmem:[#allocation9 + $0x18] sm:$0xff]
        %v486 = vld [vmem:[#allocation9 + $0x20] sm:$0xff]
        %v487 = vld [vmem:[#allocation9 + $0x28] sm:$0xff]
        %v488 = vld [vmem:[#allocation9 + $0x30] sm:$0xff]
        %v489 = vld [vmem:[#allocation9 + $0x38] sm:$0xff]
        %v490 = vld [vmem:[#allocation9 + $0x40] sm:$0xff]
        %v491 = vld [vmem:[#allocation9 + $0x48] sm:$0xff]
        %v492 = vld [vmem:[#allocation9 + $0x50] sm:$0xff]
        %v493 = vld [vmem:[#allocation9 + $0x58] sm:$0xff]
        %v494 = vld [vmem:[#allocation9 + $0x60] sm:$0xff]
        %v495 = vld [vmem:[#allocation9 + $0x68] sm:$0xff]
        %v496 = vld [vmem:[#allocation9 + $0x70] sm:$0xff]
        %v497 = vld [vmem:[#allocation9 + $0x78] sm:$0xff]
        %v498 = vld [vmem:[%s376] sm:$0x1]
        %v500 = vlaneseq
        %v501 = vshrl.u32 %v500, 7
        %v502 = vsub.s32 0, %v501
        %v503 = vrot.slane %v498, %v502
        %505 = vmatprep.subr.mxu0 0.0
        %506 = vmatpush1.msra.mxu0 %v497
        %507 = vmatprep.subr.mxu0 0.0
        %508 = vmatpush1.msra.mxu0 %v496
        %509 = vmatprep.subr.mxu0 0.0
        %510 = vmatpush1.msra.mxu0 %v495
        %511 = vmatprep.subr.mxu0 0.0
        %512 = vmatpush1.msra.mxu0 %v494
        %513 = vmatprep.subr.mxu0 0.0
        %514 = vmatpush1.msra.mxu0 %v493
        %515 = vmatprep.subr.mxu0 0.0
        %516 = vmatpush1.msra.mxu0 %v492
        %517 = vmatprep.subr.mxu0 0.0
        %518 = vmatpush1.msra.mxu0 %v491
        %519 = vmatprep.subr.mxu0 0.0
        %520 = vmatpush1.msra.mxu0 %v490
        %521 = vmatprep.subr.mxu0 0.0
        %522 = vmatpush1.msra.mxu0 %v489
        %523 = vmatprep.subr.mxu0 0.0
        %524 = vmatpush1.msra.mxu0 %v488
        %525 = vmatprep.subr.mxu0 0.0
        %526 = vmatpush1.msra.mxu0 %v487
        %527 = vmatprep.subr.mxu0 0.0
        %528 = vmatpush1.msra.mxu0 %v486
        %529 = vmatprep.subr.mxu0 0.0
        %530 = vmatpush1.msra.mxu0 %v485
        %531 = vmatprep.subr.mxu0 0.0
        %532 = vmatpush1.msra.mxu0 %v484
        %533 = vmatprep.subr.mxu0 0.0
        %534 = vmatpush1.msra.mxu0 %v483
        %535 = vmatprep.subr.mxu0 0.0
        %536 = vmatpush1.msra.mxu0 %v482
        %537 = vmatprep.subr.mxu0 0.0
        %538 = vmatpush2.msra.mxu0 0.0
        %539 = vmatprep.subr.mxu0 0.0
        %540 = vmatpush2.msra.mxu0 0.0
        %541 = vmatprep.subr.mxu0 0.0
        %542 = vmatpush2.msra.mxu0 0.0
        %543 = vmatprep.subr.mxu0 0.0
        %544 = vmatpush2.msra.mxu0 0.0
        %545 = vmatprep.subr.mxu0 0.0
        %546 = vmatpush2.msra.mxu0 0.0
        %547 = vmatprep.subr.mxu0 0.0
        %548 = vmatpush2.msra.mxu0 0.0
        %549 = vmatprep.subr.mxu0 0.0
        %550 = vmatpush2.msra.mxu0 0.0
        %551 = vmatprep.subr.mxu0 0.0
        %552 = vmatpush2.msra.mxu0 0.0
        %553 = vmatprep.subr.mxu0 0.0
        %554 = vmatpush2.msra.mxu0 0.0
        %555 = vmatprep.subr.mxu0 0.0
        %556 = vmatpush2.msra.mxu0 0.0
        %557 = vmatprep.subr.mxu0 0.0
        %558 = vmatpush2.msra.mxu0 0.0
        %559 = vmatprep.subr.mxu0 0.0
        %560 = vmatpush2.msra.mxu0 0.0
        %561 = vmatprep.subr.mxu0 0.0
        %562 = vmatpush2.msra.mxu0 0.0
        %563 = vmatprep.subr.mxu0 0.0
        %564 = vmatpush2.msra.mxu0 0.0
        %565 = vmatprep.subr.mxu0 0.0
        %566 = vmatpush2.msra.mxu0 0.0
        %567 = vmatprep.subr.mxu0 0.0
        %568 = vmatpush2.msra.mxu0 0.0
        %569 = vmatprep.mubr.f32.mxu0 0.0
        %570 = vmatmul.mubr.f32.gmra.mxu0 %v481
        %v571 = vpop.f32.mrf.mxu0
        %v572 = vadd.f32 %v503, %v571
        %v573 = vpop.f32.mrf.mxu0
        %574 = vdwg.mxu0
        %575 = vst [vmem:[%s373] sm:$0xff] %v572
        %s576 = sand.u32 %s206, 1
        %s577 = scalar_lea.sflag [#allocation5], %s576
        %s578 = sand.u32 %s206, 1
        %s579 = smul.addr %s578, 8
        %s580 = scalar_lea.vmem [#allocation11], %s579
        // Predicated region
        $region65: #{tpu_custom_call.1} parent=43 // pred_check
          %p581 = pneg %p216
        $region66: #{tpu_custom_call.1} parent=43 // pred_check_branch
          %583 = sbr.rel (%p581) target = $region68
        $region67: #{tpu_custom_call.1} parent=43 // pred_region
          %s585 = ssub.s32 128, 128
          %586 = vsyncadd %s577, %s585
          %s587 = sadd.s32 %s34, %s33
          %s588 = sadd.s32 %s587, %s32
          %s589 = smul.addr %s588, 128
          %s590 = scalar_lea.hbm %s6, %s589
          %s592 = sshll.u32 %s580, 4
          %s593 = int_to_ptr.vmem [resolvable:$true] %s592
          %595 = dma.vmem_to_hbm [thread:$0]  %s593, 128, %s590, %s577
        $region68: #{tpu_custom_call.1} parent=43 // pred_fallthru
          _
      $region44: #{tpu_custom_call.1} parent=5 // pred_fallthru
        _
      %p596 = scmp.le.s32.totalorder 2, %s22
      // Predicated region
      $region69: #{tpu_custom_call.1} parent=5 // pred_check
        %p597 = pneg %p596
      $region70: #{tpu_custom_call.1} parent=5 // pred_check_branch
        %599 = sbr.rel (%p597) target = $region72
      $region71: #{tpu_custom_call.1} parent=5 // pred_region
        %s600 = ssub.s32 %s22, 2
        // Predicated region
        $region73: #{tpu_custom_call.1} parent=71 // pred_check
          %p601 = pneg %p222
        $region74: #{tpu_custom_call.1} parent=71 // pred_check_branch
          %603 = sbr.rel (%p601) target = $region76
        $region75: #{tpu_custom_call.1} parent=71 // pred_region
          %s604 = sand.u32 %s207, 1
          %s605 = scalar_lea.sflag [#allocation5], %s604
          %s606 = sand.u32 %s207, 1
          %s607 = smul.addr %s606, 8
          %s608 = scalar_lea.vmem [#allocation11], %s607
          %609 = dma.done %s605, 128
        $region76: #{tpu_custom_call.1} parent=71 // pred_fallthru
          _
      $region72: #{tpu_custom_call.1} parent=5 // pred_fallthru
        _
    $region6: #{tpu_custom_call.1} parent=1 // loop_footer
      %s26 = sadd.s32 1, %s22
    $region7: #{tpu_custom_call.1} parent=1 // loop_footer_branch
      %21 = sbr.rel target = $region3
    $region8: #{tpu_custom_call.1} parent=1 // loop_exit
      _
    %610 = vsyncpa [#allocation4], 1
    %s611 = scalar_lea.sflag [#allocation4], 1
    %612 = vsyncpa %s611, 1
    %613 = vsyncpa [#allocation7], 1
    %s614 = scalar_lea.sflag [#allocation7], 1
    %615 = vsyncpa %s614, 1
    %616 = vsyncpa [#allocation10], 1
    %617 = vsyncpa [#allocation5], 1
    %s618 = scalar_lea.sflag [#allocation5], 1
    %619 = vsyncpa %s618, 1

</llo_original>
